<compile_context>
chip_gen: v6e
topology: v6e:2x2x1
jax: 0.10.0
libtpu: 0.0.40
codegen_flags: <defaults>
</compile_context>

<pallas_src>
import jax
import jax.numpy as jnp
from jax.experimental import pallas as pl
from jax.experimental.pallas import tpu as pltpu


# ----------------------------------------------------------------------------
# Kernels
# ----------------------------------------------------------------------------
def _head_penu_kernel(cls_ref, wd_ref, bd_ref, out_ref, acc_ref):
    """out = tanh(cls @ Wd_T + bd). K-tiled over the contraction dim."""
    k = pl.program_id(1)

    @pl.when(k == 0)
    def _init():
        acc_ref[...] = jnp.zeros_like(acc_ref)

    acc_ref[...] += jnp.dot(cls_ref[...], wd_ref[...],
                            preferred_element_type=jnp.float32)

    @pl.when(k == pl.num_programs(1) - 1)
    def _finalize():
        out_ref[...] = jnp.tanh(acc_ref[...] + bd_ref[...]).astype(out_ref.dtype)


def _head_logits_kernel(cls_ref, wd_ref, bd_ref, wo_ref, bo_ref, out_ref,
                        acc_ref):
    """out = tanh(cls @ Wd_T + bd) @ Wo_T + bo (lane-padded class dim)."""
    k = pl.program_id(1)

    @pl.when(k == 0)
    def _init():
        acc_ref[...] = jnp.zeros_like(acc_ref)

    acc_ref[...] += jnp.dot(cls_ref[...], wd_ref[...],
                            preferred_element_type=jnp.float32)

    @pl.when(k == pl.num_programs(1) - 1)
    def _finalize():
        h = jnp.tanh(acc_ref[...] + bd_ref[...])               # f32 tanh (EUP)
        logits = jnp.dot(h.astype(wo_ref.dtype), wo_ref[...],
                         preferred_element_type=jnp.float32)
        out_ref[...] = (logits + bo_ref[...]).astype(out_ref.dtype)


# ----------------------------------------------------------------------------
# Helpers
# ----------------------------------------------------------------------------
def _sublane_tile(dtype) -> int:
    """Minimum sublane-aligned row tile for a dtype (8 rows of 32-bit pack)."""
    return max(8, 32 // jnp.dtype(dtype).itemsize)


def _vmem_budget_bytes() -> int:
    """~90% of this generation's per-core VMEM (v5e/v6e 128 MiB, v7x 64 MiB)."""
    try:
        cap = int(pltpu.get_tpu_info().vmem_capacity_bytes)
    except Exception:
        cap = 64 << 20  # conservative fallback (v7x-sized)
    return int(0.9 * cap)


def prepare_head_params(w_dense, b_dense, w_out, b_out,
                        param_dtype=jnp.bfloat16):
    """One-time (model-load) prep of the classification-head parameters.

    w_dense : [H, H]  PyTorch nn.Linear weight ([out, in])
    b_dense : [H]
    w_out   : [C, H]  out_proj weight ([out, in])
    b_out   : [C]

    * Weights are transposed once to [in, out] so the kernels use a standard
      contraction (no per-tile transpose of the resident weight).
    * Weights are cast to bf16 (MXU-native, halves the dominant weight DMA);
      biases stay f32, and accumulation / tanh stay f32 inside the kernel.
    * out_proj is padded once to a lane-dense multiple of 128 classes.
    """
    H_out, H_in = w_dense.shape
    assert H_out == H_in, "classification-head dense must be square"
    H = H_in
    C = w_out.shape[0]
    C_pad = pl.cdiv(C, 128) * 128
    return dict(
        wd_t=jnp.asarray(w_dense, param_dtype).T,                     # [H, H]
        bd=jnp.asarray(b_dense, jnp.float32).reshape(1, H),           # [1, H]
        wo_t=jnp.pad(jnp.asarray(w_out, param_dtype),
                     ((0, C_pad - C), (0, 0))).T,                     # [H, C_pad]
        bo=jnp.pad(jnp.asarray(b_out, jnp.float32),
                   (0, C_pad - C)).reshape(1, C_pad),                 # [1, C_pad]
        num_classes=C,
        hidden=H,
        compute_dtype=jnp.dtype(param_dtype),
    )


# ----------------------------------------------------------------------------
# Forward
# ----------------------------------------------------------------------------
def wrap_roberta_forward(features, head_params, penu=False, k_tile=None):
    """Pallas implementation of WrapRoBERTa.forward given decoder `features`.

    features    : [B, T, H] RoBERTa decoder output (features_only=True).
    head_params : output of prepare_head_params() (one-time prep).
    Returns (x, extra): x = tanh(dense(cls)) if penu else the logits.
    Eval-mode dropout is the identity and is elided.
    """
    B, T, H = features.shape
    assert H == head_params["hidden"]
    wd_t, bd = head_params["wd_t"], head_params["bd"]
    wo_t, bo = head_params["wo_t"], head_params["bo"]
    C = head_params["num_classes"]
    C_pad = wo_t.shape[1]
    cdtype = head_params["compute_dtype"]
    out_dtype = features.dtype
    pbytes = cdtype.itemsize
    obytes = jnp.dtype(out_dtype).itemsize

    # Only the CLS rows enter the kernel -- never DMA the [B, T, H] tensor.
    # TODO(synk): could read the CLS row straight from `features` with a
    # squeezed-T BlockSpec; kept as a wrapper slice (B*H bytes, negligible)
    # until that layout is verified to lower to a clean strided DMA.
    cls = features[:, 0, :].astype(cdtype)                      # [B, H] bf16

    # Sublane-aligned batch tile (<=128 fills the MXU on every generation);
    # pad ragged batches so loads/stores stay fully lane/sublane dense.
    min_tb = _sublane_tile(cdtype)
    tb = min(128, max(min_tb, pl.next_power_of_2(B)))
    B_pad = pl.cdiv(B, tb) * tb
    if B_pad != B:
        cls = jnp.pad(cls, ((0, B_pad - B), (0, 0)))

    out_w = H if penu else C_pad
    budget = _vmem_budget_bytes()

    def _resident_bytes(tk):
        wd_b = 2 * tk * H * pbytes                    # worst case double-buffer
        act_b = 2 * tb * tk * pbytes + 2 * tb * out_w * obytes + tb * H * 4
        bias_b = 2 * (H + C_pad) * 4
        wo_b = 0 if penu else 2 * H * C_pad * pbytes
        return wd_b + act_b + bias_b + wo_b

    # K-tile the contraction dim only when the resident [H, H] weight would
    # not fit comfortably in the VMEM budget (large H on v7x).
    if (k_tile is not None and H % k_tile == 0
            and (k_tile == H or k_tile % 128 == 0)):
        tk = k_tile
    elif _resident_bytes(H) <= budget // 2:
        tk = H
    else:
        tk = H
        for cand in (512, 256, 128):
            if H % cand == 0 and _resident_bytes(cand) <= budget // 2:
                tk = cand
                break
    nk = H // tk
    grid = (B_pad // tb, nk)

    # Megacore: batch-sharding duplicates the grid-invariant weight DMA per
    # TensorCore, so only mark the batch axis "parallel" when activation
    # traffic dominates the weight traffic.  The K axis is a reduction.
    weight_bytes = H * H * pbytes + (0 if penu else H * C_pad * pbytes)
    act_bytes = B_pad * (H * pbytes + out_w * obytes)
    batch_sem = "parallel" if act_bytes > weight_bytes else "arbitrary"

    vmem_limit = int(min(max(2 * _resident_bytes(tk), 32 << 20), budget))

    cost = pl.CostEstimate(
        flops=2 * B_pad * H * H + (0 if penu else 2 * B_pad * H * C_pad),
        transcendentals=B_pad * H,
        bytes_accessed=(B_pad * H * pbytes + H * H * pbytes + H * 4
                        + (0 if penu else H * C_pad * pbytes + C_pad * 4)
                        + B_pad * out_w * obytes),
    )

    kernel = _head_penu_kernel if penu else _head_logits_kernel

    def _call(single_buffer_weights):
        def resident(shape):
            idx = lambda i, k: (0,) * len(shape)
            if single_buffer_weights:
                return pl.BlockSpec(shape, idx, pipeline_mode=pl.Buffered(1))
            return pl.BlockSpec(shape, idx)

        cls_spec = pl.BlockSpec((tb, tk), lambda i, k: (i, k))
        if nk == 1 and single_buffer_weights:
            # Weight block is grid-invariant -> single buffer it too.
            wd_spec = pl.BlockSpec((tk, H), lambda i, k: (k, 0),
                                   pipeline_mode=pl.Buffered(1))
        else:
            wd_spec = pl.BlockSpec((tk, H), lambda i, k: (k, 0))

        in_specs = [cls_spec, wd_spec, resident((1, H))]
        args = [cls, wd_t, bd]
        if not penu:
            in_specs += [resident((H, C_pad)), resident((1, C_pad))]
            args += [wo_t, bo]

        return pl.pallas_call(
            kernel,
            out_shape=jax.ShapeDtypeStruct((B_pad, out_w), out_dtype),
            grid=grid,
            in_specs=in_specs,
            out_specs=pl.BlockSpec((tb, out_w), lambda i, k: (i, 0)),
            scratch_shapes=[pltpu.VMEM((tb, H), jnp.float32)],
            compiler_params=pltpu.CompilerParams(
                dimension_semantics=(batch_sem, "arbitrary"),
                vmem_limit_bytes=vmem_limit,
            ),
            cost_estimate=cost,
        )(*args)

    try:
        # Single-buffer the grid-invariant weight/bias blocks (halves the
        # resident weight VMEM -- matters on v7x's 64 MiB).
        out_p = _call(True)
    except Exception:
        # This JAX build rejects pipeline_mode=pl.Buffered(1) -> fall back to
        # default double-buffered resident blocks (correctness identical).
        out_p = _call(False)

    # TODO(synk): `extra` (attention weights / inner states) comes from the
    # external fairseq RoBERTa decoder, which is not part of this module.
    extra = None
    x = out_p[:B] if penu else out_p[:B, :C]
    return x, extra


# ----------------------------------------------------------------------------
# Reference & self-test
# ----------------------------------------------------------------------------
def _reference_head(features, params, b_dense, b_out, penu):
    """Pure-JAX reference mirroring the kernel numerics (bf16 in, f32 acc)."""
    f32 = jnp.float32
    x = features[:, 0, :].astype(params["compute_dtype"]).astype(f32)
    h = jnp.tanh(x @ params["wd_t"].astype(f32) + jnp.asarray(b_dense, f32))
    if penu:
        return h
    C = params["num_classes"]
    logits = (h.astype(params["compute_dtype"]).astype(f32)
              @ params["wo_t"].astype(f32)[:, :C]) + jnp.asarray(b_out, f32)
    return logits


if __name__ == "__main__":
    key = jax.random.PRNGKey(0)
    keys = jax.random.split(key, 10)

    # --- Test 1: small head, resident-weight (nk == 1) path -----------------
    B, T, H, C = 2, 8, 32, 4
    features = jax.random.normal(keys[0], (B, T, H), dtype=jnp.float32)
    w_dense = 0.1 * jax.random.normal(keys[1], (H, H), dtype=jnp.float32)
    b_dense = 0.1 * jax.random.normal(keys[2], (H,), dtype=jnp.float32)
    w_out = 0.1 * jax.random.normal(keys[3], (C, H), dtype=jnp.float32)
    b_out = 0.1 * jax.random.normal(keys[4], (C,), dtype=jnp.float32)

    params = prepare_head_params(w_dense, b_dense, w_out, b_out)
    logits, _ = wrap_roberta_forward(features, params, penu=False)
    penu_feats, _ = wrap_roberta_forward(features, params, penu=True)
    jax.block_until_ready((logits, penu_feats))

    logits_ref = _reference_head(features, params, b_dense, b_out, penu=False)
    penu_ref = _reference_head(features, params, b_dense, b_out, penu=True)
    assert logits.shape == (B, C) and penu_feats.shape == (B, H)
    assert jnp.allclose(penu_feats.astype(jnp.float32), penu_ref,
                        atol=1e-2, rtol=1e-2), "penultimate mismatch"
    assert jnp.allclose(logits.astype(jnp.float32), logits_ref,
                        atol=1e-2, rtol=1e-2), "logits mismatch"

    # --- Test 2: exercise the K-tiled (large-H on v7x) path -----------------
    B2, T2, H2, C2 = 4, 4, 256, 3
    features2 = jax.random.normal(keys[5], (B2, T2, H2), dtype=jnp.float32)
    w_dense2 = 0.05 * jax.random.normal(keys[6], (H2, H2), dtype=jnp.float32)
    b_dense2 = 0.05 * jax.random.normal(keys[7], (H2,), dtype=jnp.float32)
    w_out2 = 0.05 * jax.random.normal(keys[8], (C2, H2), dtype=jnp.float32)
    b_out2 = 0.05 * jax.random.normal(keys[9], (C2,), dtype=jnp.float32)

    params2 = prepare_head_params(w_dense2, b_dense2, w_out2, b_out2)
    logits2, _ = wrap_roberta_forward(features2, params2, penu=False,
                                      k_tile=128)
    jax.block_until_ready(logits2)
    logits2_ref = _reference_head(features2, params2, b_dense2, b_out2,
                                  penu=False)
    assert logits2.shape == (B2, C2)
    assert jnp.allclose(logits2.astype(jnp.float32), logits2_ref,
                        atol=2e-2, rtol=2e-2), "k-tiled logits mismatch"

    print("KERNEL_OK")
</pallas_src>

<mosaic_0001>
module attributes {stable_mosaic.version = 11 : i64} {
  func.func @_head_logits_kernel(%arg0: i32, %arg1: i32, %arg2: memref<16x32xbf16, #tpu.memory_space<vmem>>, %arg3: memref<32x32xbf16, #tpu.memory_space<vmem>>, %arg4: memref<1x32xf32, #tpu.memory_space<vmem>>, %arg5: memref<32x128xbf16, #tpu.memory_space<vmem>>, %arg6: memref<1x128xf32, #tpu.memory_space<vmem>>, %arg7: memref<16x128xf32, #tpu.memory_space<vmem>>, %arg8: memref<16x32xf32, #tpu.memory_space<vmem>>) attributes {dimension_semantics = [#tpu.dimension_semantics<arbitrary>, #tpu.dimension_semantics<arbitrary>], iteration_bounds = array<i64: 1, 1>, scalar_prefetch = 0 : i64, scratch_operands = 1 : i64, tpu.core_type = #tpu.core_type<tc>, window_params = [{transform_indices = @transform_0, window_bounds = array<i64: 16, 32>}, {pipeline_mode = #tpu.pipeline_mode<synchronous>, transform_indices = @transform_1, window_bounds = array<i64: 32, 32>}, {pipeline_mode = #tpu.pipeline_mode<synchronous>, transform_indices = @transform_2, window_bounds = array<i64: 1, 32>}, {pipeline_mode = #tpu.pipeline_mode<synchronous>, transform_indices = @transform_3, window_bounds = array<i64: 32, 128>}, {pipeline_mode = #tpu.pipeline_mode<synchronous>, transform_indices = @transform_4, window_bounds = array<i64: 1, 128>}, {transform_indices = @transform_5, window_bounds = array<i64: 16, 128>}]} {
    %c0_i32 = arith.constant 0 : i32
    %0 = arith.cmpi eq, %arg1, %c0_i32 : i32
    %1 = arith.extui %0 : i1 to i32
    %c0_i32_0 = arith.constant 0 : i32
    %2 = arith.cmpi ne, %1, %c0_i32_0 : i32
    scf.if %2 {
      %cst_10 = arith.constant 0.000000e+00 : f32
      %12 = vector.broadcast %cst_10 : f32 to vector<16x32xf32>
      %c0_11 = arith.constant 0 : index
      %c0_12 = arith.constant 0 : index
      %13 = vector.load %arg8[%c0_11, %c0_12] : memref<16x32xf32, #tpu.memory_space<vmem>>, vector<16x32xf32>
      tpu.vector_store %arg8[%c0_11, %c0_12], %12 {strides = array<i32>} : memref<16x32xf32, #tpu.memory_space<vmem>>, vector<16x32xf32>,
    } else {
    }
    %c0 = arith.constant 0 : index
    %c0_1 = arith.constant 0 : index
    %3 = vector.load %arg8[%c0, %c0_1] : memref<16x32xf32, #tpu.memory_space<vmem>>, vector<16x32xf32>
    %c0_2 = arith.constant 0 : index
    %c0_3 = arith.constant 0 : index
    %4 = vector.load %arg2[%c0_2, %c0_3] : memref<16x32xbf16, #tpu.memory_space<vmem>>, vector<16x32xbf16>
    %c0_4 = arith.constant 0 : index
    %c0_5 = arith.constant 0 : index
    %5 = vector.load %arg3[%c0_4, %c0_5] : memref<32x32xbf16, #tpu.memory_space<vmem>>, vector<32x32xbf16>
    %cst = arith.constant dense<0.000000e+00> : vector<16x32xf32>
    %6 = tpu.matmul %4, %5, %cst {dimension_numbers = #tpu.dot_dimension_numbers<[1], [0], [0], [1], [0, 0, 1, 1], [], []>} : vector<16x32xbf16>, vector<32x32xbf16>, vector<16x32xf32> -> vector<16x32xf32>
    %7 = arith.addf %3, %6 : vector<16x32xf32>
    %c0_6 = arith.constant 0 : index
    %c0_7 = arith.constant 0 : index
    %8 = vector.load %arg8[%c0_6, %c0_7] : memref<16x32xf32, #tpu.memory_space<vmem>>, vector<16x32xf32>
    tpu.vector_store %arg8[%c0_6, %c0_7], %7 {strides = array<i32>} : memref<16x32xf32, #tpu.memory_space<vmem>>, vector<16x32xf32>,
    %c0_i32_8 = arith.constant 0 : i32
    %9 = arith.cmpi eq, %arg1, %c0_i32_8 : i32
    %10 = arith.extui %9 : i1 to i32
    %c0_i32_9 = arith.constant 0 : i32
    %11 = arith.cmpi ne, %10, %c0_i32_9 : i32
    scf.if %11 {
      %c0_10 = arith.constant 0 : index
      %c0_11 = arith.constant 0 : index
      %12 = vector.load %arg8[%c0_10, %c0_11] : memref<16x32xf32, #tpu.memory_space<vmem>>, vector<16x32xf32>
      %c0_12 = arith.constant 0 : index
      %c0_13 = arith.constant 0 : index
      %13 = vector.load %arg4[%c0_12, %c0_13] : memref<1x32xf32, #tpu.memory_space<vmem>>, vector<1x32xf32>
      %14 = vector.broadcast %13 : vector<1x32xf32> to vector<16x32xf32>
      %15 = arith.addf %12, %14 : vector<16x32xf32>
      %16 = math.tanh %15 : vector<16x32xf32>
      %17 = arith.truncf %16 : vector<16x32xf32> to vector<16x32xbf16>
      %c0_14 = arith.constant 0 : index
      %c0_15 = arith.constant 0 : index
      %18 = vector.load %arg5[%c0_14, %c0_15] : memref<32x128xbf16, #tpu.memory_space<vmem>>, vector<32x128xbf16>
      %cst_16 = arith.constant dense<0.000000e+00> : vector<16x128xf32>
      %19 = tpu.matmul %17, %18, %cst_16 {dimension_numbers = #tpu.dot_dimension_numbers<[1], [0], [0], [1], [0, 0, 1, 1], [], []>} : vector<16x32xbf16>, vector<32x128xbf16>, vector<16x128xf32> -> vector<16x128xf32>
      %c0_17 = arith.constant 0 : index
      %c0_18 = arith.constant 0 : index
      %20 = vector.load %arg6[%c0_17, %c0_18] : memref<1x128xf32, #tpu.memory_space<vmem>>, vector<1x128xf32>
      %21 = vector.broadcast %20 : vector<1x128xf32> to vector<16x128xf32>
      %22 = arith.addf %19, %21 : vector<16x128xf32>
      %c0_19 = arith.constant 0 : index
      %c0_20 = arith.constant 0 : index
      %23 = vector.load %arg7[%c0_19, %c0_20] : memref<16x128xf32, #tpu.memory_space<vmem>>, vector<16x128xf32>
      tpu.vector_store %arg7[%c0_19, %c0_20], %22 {strides = array<i32>} : memref<16x128xf32, #tpu.memory_space<vmem>>, vector<16x128xf32>,
    } else {
    }
    return
  }
  func.func @transform_0(%arg0: i32, %arg1: i32) -> (i32, i32) {
    %c0_i32 = arith.constant 0 : i32
    return %arg0, %arg1 : i32, i32
  }
  func.func @transform_1(%arg0: i32, %arg1: i32) -> (i32, i32) {
    %c0_i32 = arith.constant 0 : i32
    %c0_i32_0 = arith.constant 0 : i32
    return %arg1, %c0_i32 : i32, i32
  }
  func.func @transform_2(%arg0: i32, %arg1: i32) -> (i32, i32) {
    %c0_i32 = arith.constant 0 : i32
    %c0_i32_0 = arith.constant 0 : i32
    %c0_i32_1 = arith.constant 0 : i32
    return %c0_i32, %c0_i32_0 : i32, i32
  }
  func.func @transform_3(%arg0: i32, %arg1: i32) -> (i32, i32) {
    %c0_i32 = arith.constant 0 : i32
    %c0_i32_0 = arith.constant 0 : i32
    %c0_i32_1 = arith.constant 0 : i32
    return %c0_i32, %c0_i32_0 : i32, i32
  }
  func.func @transform_4(%arg0: i32, %arg1: i32) -> (i32, i32) {
    %c0_i32 = arith.constant 0 : i32
    %c0_i32_0 = arith.constant 0 : i32
    %c0_i32_1 = arith.constant 0 : i32
    return %c0_i32, %c0_i32_0 : i32, i32
  }
  func.func @transform_5(%arg0: i32, %arg1: i32) -> (i32, i32) {
    %c0_i32 = arith.constant 0 : i32
    %c0_i32_0 = arith.constant 0 : i32
    return %arg0, %c0_i32 : i32, i32
  }
}

module attributes {stable_mosaic.version = 11 : i64} {
  func.func @_head_logits_kernel(%arg0: i32, %arg1: i32, %arg2: memref<16x32xbf16, #tpu.memory_space<vmem>>, %arg3: memref<32x32xbf16, #tpu.memory_space<vmem>>, %arg4: memref<1x32xf32, #tpu.memory_space<vmem>>, %arg5: memref<32x128xbf16, #tpu.memory_space<vmem>>, %arg6: memref<1x128xf32, #tpu.memory_space<vmem>>, %arg7: memref<16x128xf32, #tpu.memory_space<vmem>>, %arg8: memref<16x32xf32, #tpu.memory_space<vmem>>) attributes {dimension_semantics = [#tpu.dimension_semantics<arbitrary>, #tpu.dimension_semantics<arbitrary>], iteration_bounds = array<i64: 1, 1>, scalar_prefetch = 0 : i64, scratch_operands = 1 : i64, tpu.core_type = #tpu.core_type<tc>, window_params = [{transform_indices = @transform_0, window_bounds = array<i64: 16, 32>}, {transform_indices = @transform_1, window_bounds = array<i64: 32, 32>}, {pipeline_mode = #tpu.pipeline_mode<synchronous>, transform_indices = @transform_2, window_bounds = array<i64: 1, 32>}, {pipeline_mode = #tpu.pipeline_mode<synchronous>, transform_indices = @transform_3, window_bounds = array<i64: 32, 128>}, {pipeline_mode = #tpu.pipeline_mode<synchronous>, transform_indices = @transform_4, window_bounds = array<i64: 1, 128>}, {transform_indices = @transform_5, window_bounds = array<i64: 16, 128>}]} {
    %c0_i32 = arith.constant 0 : i32
    %0 = arith.cmpi eq, %arg1, %c0_i32 : i32
    %1 = arith.extui %0 : i1 to i32
    %c0_i32_0 = arith.constant 0 : i32
    %2 = arith.cmpi ne, %1, %c0_i32_0 : i32
    scf.if %2 {
      %cst_10 = arith.constant 0.000000e+00 : f32
      %12 = vector.broadcast %cst_10 : f32 to vector<16x32xf32>
      %c0_11 = arith.constant 0 : index
      %c0_12 = arith.constant 0 : index
      %13 = vector.load %arg8[%c0_11, %c0_12] : memref<16x32xf32, #tpu.memory_space<vmem>>, vector<16x32xf32>
      tpu.vector_store %arg8[%c0_11, %c0_12], %12 {strides = array<i32>} : memref<16x32xf32, #tpu.memory_space<vmem>>, vector<16x32xf32>,
    } else {
    }
    %c0 = arith.constant 0 : index
    %c0_1 = arith.constant 0 : index
    %3 = vector.load %arg8[%c0, %c0_1] : memref<16x32xf32, #tpu.memory_space<vmem>>, vector<16x32xf32>
    %c0_2 = arith.constant 0 : index
    %c0_3 = arith.constant 0 : index
    %4 = vector.load %arg2[%c0_2, %c0_3] : memref<16x32xbf16, #tpu.memory_space<vmem>>, vector<16x32xbf16>
    %c0_4 = arith.constant 0 : index
    %c0_5 = arith.constant 0 : index
    %5 = vector.load %arg3[%c0_4, %c0_5] : memref<32x32xbf16, #tpu.memory_space<vmem>>, vector<32x32xbf16>
    %cst = arith.constant dense<0.000000e+00> : vector<16x32xf32>
    %6 = tpu.matmul %4, %5, %cst {dimension_numbers = #tpu.dot_dimension_numbers<[1], [0], [0], [1], [0, 0, 1, 1], [], []>} : vector<16x32xbf16>, vector<32x32xbf16>, vector<16x32xf32> -> vector<16x32xf32>
    %7 = arith.addf %3, %6 : vector<16x32xf32>
    %c0_6 = arith.constant 0 : index
    %c0_7 = arith.constant 0 : index
    %8 = vector.load %arg8[%c0_6, %c0_7] : memref<16x32xf32, #tpu.memory_space<vmem>>, vector<16x32xf32>
    tpu.vector_store %arg8[%c0_6, %c0_7], %7 {strides = array<i32>} : memref<16x32xf32, #tpu.memory_space<vmem>>, vector<16x32xf32>,
    %c0_i32_8 = arith.constant 0 : i32
    %9 = arith.cmpi eq, %arg1, %c0_i32_8 : i32
    %10 = arith.extui %9 : i1 to i32
    %c0_i32_9 = arith.constant 0 : i32
    %11 = arith.cmpi ne, %10, %c0_i32_9 : i32
    scf.if %11 {
      %c0_10 = arith.constant 0 : index
      %c0_11 = arith.constant 0 : index
      %12 = vector.load %arg8[%c0_10, %c0_11] : memref<16x32xf32, #tpu.memory_space<vmem>>, vector<16x32xf32>
      %c0_12 = arith.constant 0 : index
      %c0_13 = arith.constant 0 : index
      %13 = vector.load %arg4[%c0_12, %c0_13] : memref<1x32xf32, #tpu.memory_space<vmem>>, vector<1x32xf32>
      %14 = vector.broadcast %13 : vector<1x32xf32> to vector<16x32xf32>
      %15 = arith.addf %12, %14 : vector<16x32xf32>
      %16 = math.tanh %15 : vector<16x32xf32>
      %17 = arith.truncf %16 : vector<16x32xf32> to vector<16x32xbf16>
      %c0_14 = arith.constant 0 : index
      %c0_15 = arith.constant 0 : index
      %18 = vector.load %arg5[%c0_14, %c0_15] : memref<32x128xbf16, #tpu.memory_space<vmem>>, vector<32x128xbf16>
      %cst_16 = arith.constant dense<0.000000e+00> : vector<16x128xf32>
      %19 = tpu.matmul %17, %18, %cst_16 {dimension_numbers = #tpu.dot_dimension_numbers<[1], [0], [0], [1], [0, 0, 1, 1], [], []>} : vector<16x32xbf16>, vector<32x128xbf16>, vector<16x128xf32> -> vector<16x128xf32>
      %c0_17 = arith.constant 0 : index
      %c0_18 = arith.constant 0 : index
      %20 = vector.load %arg6[%c0_17, %c0_18] : memref<1x128xf32, #tpu.memory_space<vmem>>, vector<1x128xf32>
      %21 = vector.broadcast %20 : vector<1x128xf32> to vector<16x128xf32>
      %22 = arith.addf %19, %21 : vector<16x128xf32>
      %c0_19 = arith.constant 0 : index
      %c0_20 = arith.constant 0 : index
      %23 = vector.load %arg7[%c0_19, %c0_20] : memref<16x128xf32, #tpu.memory_space<vmem>>, vector<16x128xf32>
      tpu.vector_store %arg7[%c0_19, %c0_20], %22 {strides = array<i32>} : memref<16x128xf32, #tpu.memory_space<vmem>>, vector<16x128xf32>,
    } else {
    }
    return
  }
  func.func @transform_0(%arg0: i32, %arg1: i32) -> (i32, i32) {
    %c0_i32 = arith.constant 0 : i32
    return %arg0, %arg1 : i32, i32
  }
  func.func @transform_1(%arg0: i32, %arg1: i32) -> (i32, i32) {
    %c0_i32 = arith.constant 0 : i32
    %c0_i32_0 = arith.constant 0 : i32
    return %arg1, %c0_i32 : i32, i32
  }
  func.func @transform_2(%arg0: i32, %arg1: i32) -> (i32, i32) {
    %c0_i32 = arith.constant 0 : i32
    %c0_i32_0 = arith.constant 0 : i32
    %c0_i32_1 = arith.constant 0 : i32
    return %c0_i32, %c0_i32_0 : i32, i32
  }
  func.func @transform_3(%arg0: i32, %arg1: i32) -> (i32, i32) {
    %c0_i32 = arith.constant 0 : i32
    %c0_i32_0 = arith.constant 0 : i32
    %c0_i32_1 = arith.constant 0 : i32
    return %c0_i32, %c0_i32_0 : i32, i32
  }
  func.func @transform_4(%arg0: i32, %arg1: i32) -> (i32, i32) {
    %c0_i32 = arith.constant 0 : i32
    %c0_i32_0 = arith.constant 0 : i32
    %c0_i32_1 = arith.constant 0 : i32
    return %c0_i32, %c0_i32_0 : i32, i32
  }
  func.func @transform_5(%arg0: i32, %arg1: i32) -> (i32, i32) {
    %c0_i32 = arith.constant 0 : i32
    %c0_i32_0 = arith.constant 0 : i32
    return %arg0, %c0_i32 : i32, i32
  }
}

</mosaic_0001>

<llo_original>
// kernel: tpu_custom_call.1
$region0: #{tpu_custom_call.1}
  #allocation0 [shape = 'u32[]', space=smem, size = 0x4, offset = 0x4, fixed_abs, tag = 'smem constant byte address 0x4 - core index']
  #allocation1 [shape = 'u32[144,128]{1,0:T(1,128)}', space=vmem, size = 0x12000, scoped, tag = 'internal scratch']
  #allocation2 [shape = 'f32[16,32]{1,0:T(8,128)}', space=vmem, size = 0x2000, scoped, tag = 'scratch operand']
  %s0 = inlined_call_operand.hbm [shape: bf16[16,32], index: 0, kind: input, shape index: {}]
  %s1 = inlined_call_operand.hbm [shape: bf16[32,32], index: 1, kind: input, shape index: {}]
  %s2 = inlined_call_operand.vmem [shape: f32[1,32], index: 2, kind: input, shape index: {}]
  %s3 = inlined_call_operand.hbm [shape: bf16[32,128], index: 3, kind: input, shape index: {}]
  %s4 = inlined_call_operand.vmem [shape: f32[1,128], index: 4, kind: input, shape index: {}]
  %s5 = inlined_call_operand.hbm [shape: f32[16,128], index: 5, kind: output, shape index: {}]
  %s6 = sld [smem:[#allocation0]]
  $region50: #{tpu_custom_call.1} parent=0
    _
  %s8 = ssub.s32 1, %s6
  %s9 = scalar_select 0, %s8, %s6
  $region1: #{tpu_custom_call.1} parent=0
    #allocation3 [shape = 'u8[4096]{0}', space=vmem, size = 0x1000, scoped, tag = 'input window, operand 0, single buffered']
    #allocation4 [shape = 's32[1]{0}', space=sflag, size = 0x4, scoped, tag = 'scoped memory for tpu_custom_call.1']
    #allocation5 [shape = 's32[1]{0}', space=sflag, size = 0x4, scoped, tag = 'scoped memory for tpu_custom_call.1']
    #allocation6 [shape = 'u8[8192]{0}', space=vmem, size = 0x2000, scoped, tag = 'input window, operand 1, single buffered']
    #allocation7 [shape = 's32[1]{0}', space=sflag, size = 0x4, scoped, tag = 'scoped memory for tpu_custom_call.1']
    #allocation8 [shape = 'u8[8192]{0}', space=vmem, size = 0x2000, scoped, tag = 'input window, operand 3, single buffered']
    #allocation9 [shape = 'u8[8192]{0}', space=vmem, size = 0x2000, scoped, tag = 'output window, operand 0, single buffered']
    %10 = vsyncpa [#allocation4], 0
    %11 = vsyncpa [#allocation7], 0
    %12 = vsyncpa [#allocation5], 0
    // Predicated region
    $region2: #{tpu_custom_call.1} parent=1 // pred_check
      _
    $region3: #{tpu_custom_call.1} parent=1 // pred_check_branch
      %14 = sbr.rel (0) target = $region5
    $region4: #{tpu_custom_call.1} parent=1 // pred_region
      %s16 = ssub.s32 128, 128
      %17 = vsyncadd [#allocation4], %s16
      %s18 = sshll.u32 [#allocation3], 4
      %s19 = int_to_ptr.vmem [resolvable:$true] %s18
      %24 = dma.hbm_to_vmem [thread:$0]  %s0, 128, %s19, [#allocation4], 64, 64, 4
    $region5: #{tpu_custom_call.1} parent=1 // pred_fallthru
      _
    // Predicated region
    $region6: #{tpu_custom_call.1} parent=1 // pred_check
      _
    $region7: #{tpu_custom_call.1} parent=1 // pred_check_branch
      %26 = sbr.rel (0) target = $region9
    $region8: #{tpu_custom_call.1} parent=1 // pred_region
      %s28 = ssub.s32 256, 256
      %29 = vsyncadd [#allocation7], %s28
      %s30 = sshll.u32 [#allocation6], 4
      %s31 = int_to_ptr.vmem [resolvable:$true] %s30
      %36 = dma.hbm_to_vmem [thread:$0]  %s1, 256, %s31, [#allocation7], 64, 64, 4
    $region9: #{tpu_custom_call.1} parent=1 // pred_fallthru
      _
    // Predicated region
    $region10: #{tpu_custom_call.1} parent=1 // pred_check
      _
    $region11: #{tpu_custom_call.1} parent=1 // pred_check_branch
      %38 = sbr.rel (0) target = $region13
    $region12: #{tpu_custom_call.1} parent=1 // pred_region
      _
    $region13: #{tpu_custom_call.1} parent=1 // pred_fallthru
      _
    // Predicated region
    $region14: #{tpu_custom_call.1} parent=1 // pred_check
      _
    $region15: #{tpu_custom_call.1} parent=1 // pred_check_branch
      %40 = sbr.rel (0) target = $region17
    $region16: #{tpu_custom_call.1} parent=1 // pred_region
      %s42 = ssub.s32 256, 256
      %43 = vsyncadd [#allocation7], %s42
      %s44 = sshll.u32 [#allocation8], 4
      %s45 = int_to_ptr.vmem [resolvable:$true] %s44
      %50 = dma.hbm_to_vmem [thread:$0]  %s3, 256, %s45, [#allocation7], 64, 64, 4
    $region17: #{tpu_custom_call.1} parent=1 // pred_fallthru
      _
    // Predicated region
    $region18: #{tpu_custom_call.1} parent=1 // pred_check
      _
    $region19: #{tpu_custom_call.1} parent=1 // pred_check_branch
      %52 = sbr.rel (0) target = $region21
    $region20: #{tpu_custom_call.1} parent=1 // pred_region
      _
    $region21: #{tpu_custom_call.1} parent=1 // pred_fallthru
      _
    // Predicated region
    $region22: #{tpu_custom_call.1} parent=1 // pred_check
      _
    $region23: #{tpu_custom_call.1} parent=1 // pred_check_branch
      %54 = sbr.rel (0) target = $region25
    $region24: #{tpu_custom_call.1} parent=1 // pred_region
      %55 = dma.done [#allocation4], 128
    $region25: #{tpu_custom_call.1} parent=1 // pred_fallthru
      _
    // Predicated region
    $region26: #{tpu_custom_call.1} parent=1 // pred_check
      _
    $region27: #{tpu_custom_call.1} parent=1 // pred_check_branch
      %57 = sbr.rel (0) target = $region29
    $region28: #{tpu_custom_call.1} parent=1 // pred_region
      %58 = dma.done [#allocation7], 256
    $region29: #{tpu_custom_call.1} parent=1 // pred_fallthru
      _
    // Predicated region
    $region30: #{tpu_custom_call.1} parent=1 // pred_check
      _
    $region31: #{tpu_custom_call.1} parent=1 // pred_check_branch
      %60 = sbr.rel (0) target = $region33
    $region32: #{tpu_custom_call.1} parent=1 // pred_region
      %61 = dma.done [#allocation7], 256
    $region33: #{tpu_custom_call.1} parent=1 // pred_fallthru
      _
    %p63 = scmp.eq.s32.totalorder 0, 0
    // Predicated region
    $region34: #{tpu_custom_call.1} parent=1 // pred_check
      %p64 = pneg %p63
    $region35: #{tpu_custom_call.1} parent=1 // pred_check_branch
      %66 = sbr.rel (%p64) target = $region37
    $region36: #{tpu_custom_call.1} parent=1 // pred_region
      %vm67 = vcmask 261120
      %68 = vst.msk [vmem:[#allocation2] sm:$0xff] %vm67, 0.0
      %69 = vst.msk [vmem:[#allocation2 + $0x8] sm:$0xff] %vm67, 0.0
    $region37: #{tpu_custom_call.1} parent=1 // pred_fallthru
      _
    %v70 = vld [vmem:[#allocation2] sm:$0xff]
    %v71 = vld [vmem:[#allocation2 + $0x8] sm:$0xff]
    %v72 = vld [vmem:[#allocation3] sm:$0xf]
    %v73 = vld [vmem:[#allocation3 + $0x4] sm:$0xf]
    %v74 = vld [vmem:[#allocation6] sm:$0xf]
    %v75 = vld [vmem:[#allocation6 + $0x4] sm:$0xf]
    %v76 = vld [vmem:[#allocation6 + $0x8] sm:$0xf]
    %v77 = vld [vmem:[#allocation6 + $0xc] sm:$0xf]
    %v80 = vunpack.c.l.b16 %v72
    %v81 = vunpack.c.l.b16 %v73
    %v82 = vpack.c.b16 %v81, %v80
    %v87 = vunpack.c.l.b16 %v74
    %v88 = vunpack.c.l.b16 %v75
    %v89 = vunpack.c.l.b16 %v76
    %v90 = vunpack.c.l.b16 %v77
    %v91 = vpack.c.b16 %v88, %v87
    %v92 = vpack.c.b16 %v90, %v89
    %vm95 = vcmask 261120
    %v97 = vsel %vm95, %v82, 0
    %99 = vmatprep.subr.bf16.mxu0 0
    %100 = vmatpush1.bf16.msra.mxu0 0
    %101 = vmatprep.subr.bf16.mxu0 0
    %102 = vmatpush1.bf16.msra.mxu0 0
    %103 = vmatprep.subr.bf16.mxu0 0
    %104 = vmatpush1.bf16.msra.mxu0 0
    %105 = vmatprep.subr.bf16.mxu0 0
    %106 = vmatpush1.bf16.msra.mxu0 0
    %107 = vmatprep.subr.bf16.mxu0 0
    %108 = vmatpush1.bf16.msra.mxu0 0
    %109 = vmatprep.subr.bf16.mxu0 0
    %110 = vmatpush1.bf16.msra.mxu0 0
    %111 = vmatprep.subr.bf16.mxu0 0
    %112 = vmatpush1.bf16.msra.mxu0 %v92
    %113 = vmatprep.subr.bf16.mxu0 0
    %114 = vmatpush1.bf16.msra.mxu0 %v91
    %115 = vmatprep.subr.bf16.mxu0 0
    %116 = vmatpush2.bf16.msra.mxu0 0
    %117 = vmatprep.subr.bf16.mxu0 0
    %118 = vmatpush2.bf16.msra.mxu0 0
    %119 = vmatprep.subr.bf16.mxu0 0
    %120 = vmatpush2.bf16.msra.mxu0 0
    %121 = vmatprep.subr.bf16.mxu0 0
    %122 = vmatpush2.bf16.msra.mxu0 0
    %123 = vmatprep.subr.bf16.mxu0 0
    %124 = vmatpush2.bf16.msra.mxu0 0
    %125 = vmatprep.subr.bf16.mxu0 0
    %126 = vmatpush2.bf16.msra.mxu0 0
    %127 = vmatprep.subr.bf16.mxu0 0
    %128 = vmatpush2.bf16.msra.mxu0 0
    %129 = vmatprep.subr.bf16.mxu0 0
    %130 = vmatpush2.bf16.msra.mxu0 0
    %131 = vmatprep.mubr.bf16.mxu0 0
    %132 = vmatmul.mubr.bf16.gmra.mxu0 %v97
    %v133 = vpop.f32.mrf.mxu0
    %v134 = vadd.f32 0.0, %v133
    %v135 = vpop.f32.mrf.mxu0
    %v136 = vpop.f32.mrf.mxu0
    %v137 = vadd.f32 0.0, %v136
    %v138 = vpop.f32.mrf.mxu0
    %139 = vdwg.mxu0
    %v140 = vadd.f32 %v70, %v134
    %v141 = vadd.f32 %v71, %v137
    %142 = vst.msk [vmem:[#allocation2] sm:$0xff] %vm95, %v140
    %143 = vst.msk [vmem:[#allocation2 + $0x8] sm:$0xff] %vm95, %v141
    // Predicated region
    $region38: #{tpu_custom_call.1} parent=1 // pred_check
      %p144 = pneg %p63
    $region39: #{tpu_custom_call.1} parent=1 // pred_check_branch
      %146 = sbr.rel (%p144) target = $region41
    $region40: #{tpu_custom_call.1} parent=1 // pred_region
      %v147 = vld [vmem:[#allocation2] sm:$0xff]
      %v148 = vld [vmem:[#allocation2 + $0x8] sm:$0xff]
      %v149 = vld [vmem:[%s2] sm:$0x1]
      %v151 = vlaneseq
      %v152 = vshrl.u32 %v151, 7
      %v153 = vsub.s32 0, %v152
      %v154 = vrot.slane %v149, %v153
      %v156 = vadd.f32 %v147, %v154
      %v157 = vadd.f32 %v148, %v154
      %v158 = vtanh.pop %v156
      %v159 = vtanh.pop %v157
      %v160 = vpack.c.bf16 %v159, %v158
      %v161 = vld [vmem:[#allocation8] sm:$0xf]
      %v162 = vld [vmem:[#allocation8 + $0x4] sm:$0xf]
      %v163 = vld [vmem:[#allocation8 + $0x8] sm:$0xf]
      %v164 = vld [vmem:[#allocation8 + $0xc] sm:$0xf]
      %v165 = vld [vmem:[%s4] sm:$0x1]
      %v167 = vlaneseq
      %v168 = vshrl.u32 %v167, 7
      %v169 = vsub.s32 0, %v168
      %v170 = vrot.slane %v165, %v169
      %v176 = vunpack.c.l.b16 %v161
      %v177 = vunpack.c.l.b16 %v162
      %v178 = vunpack.c.l.b16 %v163
      %v179 = vunpack.c.l.b16 %v164
      %v180 = vpack.c.b16 %v177, %v176
      %v181 = vpack.c.b16 %v179, %v178
      %v185 = vsel %vm95, %v160, 0
      %187 = vmatprep.subr.bf16.mxu0 0
      %188 = vmatpush1.bf16.msra.mxu0 0
      %189 = vmatprep.subr.bf16.mxu0 0
      %190 = vmatpush1.bf16.msra.mxu0 0
      %191 = vmatprep.subr.bf16.mxu0 0
      %192 = vmatpush1.bf16.msra.mxu0 0
      %193 = vmatprep.subr.bf16.mxu0 0
      %194 = vmatpush1.bf16.msra.mxu0 0
      %195 = vmatprep.subr.bf16.mxu0 0
      %196 = vmatpush1.bf16.msra.mxu0 0
      %197 = vmatprep.subr.bf16.mxu0 0
      %198 = vmatpush1.bf16.msra.mxu0 0
      %199 = vmatprep.subr.bf16.mxu0 0
      %200 = vmatpush1.bf16.msra.mxu0 %v181
      %201 = vmatprep.subr.bf16.mxu0 0
      %202 = vmatpush1.bf16.msra.mxu0 %v180
      %203 = vmatprep.subr.bf16.mxu0 0
      %204 = vmatpush2.bf16.msra.mxu0 0
      %205 = vmatprep.subr.bf16.mxu0 0
      %206 = vmatpush2.bf16.msra.mxu0 0
      %207 = vmatprep.subr.bf16.mxu0 0
      %208 = vmatpush2.bf16.msra.mxu0 0
      %209 = vmatprep.subr.bf16.mxu0 0
      %210 = vmatpush2.bf16.msra.mxu0 0
      %211 = vmatprep.subr.bf16.mxu0 0
      %212 = vmatpush2.bf16.msra.mxu0 0
      %213 = vmatprep.subr.bf16.mxu0 0
      %214 = vmatpush2.bf16.msra.mxu0 0
      %215 = vmatprep.subr.bf16.mxu0 0
      %216 = vmatpush2.bf16.msra.mxu0 0
      %217 = vmatprep.subr.bf16.mxu0 0
      %218 = vmatpush2.bf16.msra.mxu0 0
      %219 = vmatprep.mubr.bf16.mxu0 0
      %220 = vmatmul.mubr.bf16.gmra.mxu0 %v185
      %v221 = vpop.f32.mrf.mxu0
      %v222 = vadd.f32 %v170, %v221
      %v223 = vpop.f32.mrf.mxu0
      %v224 = vpop.f32.mrf.mxu0
      %v225 = vadd.f32 %v170, %v224
      %v226 = vpop.f32.mrf.mxu0
      %227 = vdwg.mxu0
      %228 = vst [vmem:[#allocation9] sm:$0xff] %v222
      %229 = vst [vmem:[#allocation9 + $0x8] sm:$0xff] %v225
    $region41: #{tpu_custom_call.1} parent=1 // pred_fallthru
      _
    // Predicated region
    $region42: #{tpu_custom_call.1} parent=1 // pred_check
      _
    $region43: #{tpu_custom_call.1} parent=1 // pred_check_branch
      %231 = sbr.rel (0) target = $region45
    $region44: #{tpu_custom_call.1} parent=1 // pred_region
      %s233 = ssub.s32 256, 256
      %234 = vsyncadd [#allocation5], %s233
      %s235 = sshll.u32 [#allocation9], 4
      %s236 = int_to_ptr.vmem [resolvable:$true] %s235
      %241 = dma.vmem_to_hbm [thread:$0]  %s236, 256, %s5, [#allocation5], 128, 128, 8
    $region45: #{tpu_custom_call.1} parent=1 // pred_fallthru
      _
    // Predicated region
    $region46: #{tpu_custom_call.1} parent=1 // pred_check
      _
    $region47: #{tpu_custom_call.1} parent=1 // pred_check_branch
      %243 = sbr.rel (0) target = $region49
    $region48: #{tpu_custom_call.1} parent=1 // pred_region
      %244 = dma.done [#allocation5], 256
    $region49: #{tpu_custom_call.1} parent=1 // pred_fallthru
      _
    %245 = vsyncpa [#allocation4], 1
    %246 = vsyncpa [#allocation7], 1
    %247 = vsyncpa [#allocation5], 1

// kernel: tpu_custom_call.1
$region0: #{tpu_custom_call.1}
  #allocation0 [shape = 'u32[]', space=smem, size = 0x4, offset = 0x4, fixed_abs, tag = 'smem constant byte address 0x4 - core index']
  #allocation1 [shape = 'u32[144,128]{1,0:T(1,128)}', space=vmem, size = 0x12000, scoped, tag = 'internal scratch']
  #allocation2 [shape = 'f32[16,32]{1,0:T(8,128)}', space=vmem, size = 0x2000, scoped, tag = 'scratch operand']
  %s0 = inlined_call_operand.hbm [shape: bf16[16,32], index: 0, kind: input, shape index: {}]
  %s1 = inlined_call_operand.hbm [shape: bf16[32,32], index: 1, kind: input, shape index: {}]
  %s2 = inlined_call_operand.vmem [shape: f32[1,32], index: 2, kind: input, shape index: {}]
  %s3 = inlined_call_operand.hbm [shape: bf16[32,128], index: 3, kind: input, shape index: {}]
  %s4 = inlined_call_operand.vmem [shape: f32[1,128], index: 4, kind: input, shape index: {}]
  %s5 = inlined_call_operand.hbm [shape: f32[16,128], index: 5, kind: output, shape index: {}]
  %s6 = sld [smem:[#allocation0]]
  $region50: #{tpu_custom_call.1} parent=0
    _
  %s8 = ssub.s32 1, %s6
  %s9 = scalar_select 0, %s8, %s6
  $region1: #{tpu_custom_call.1} parent=0
    #allocation3 [shape = 'u8[4096]{0}', space=vmem, size = 0x1000, scoped, tag = 'input window, operand 0, single buffered']
    #allocation4 [shape = 's32[1]{0}', space=sflag, size = 0x4, scoped, tag = 'scoped memory for tpu_custom_call.1']
    #allocation5 [shape = 's32[1]{0}', space=sflag, size = 0x4, scoped, tag = 'scoped memory for tpu_custom_call.1']
    #allocation6 [shape = 'u8[8192]{0}', space=vmem, size = 0x2000, scoped, tag = 'input window, operand 1, single buffered']
    #allocation7 [shape = 's32[1]{0}', space=sflag, size = 0x4, scoped, tag = 'scoped memory for tpu_custom_call.1']
    #allocation8 [shape = 'u8[8192]{0}', space=vmem, size = 0x2000, scoped, tag = 'input window, operand 3, single buffered']
    #allocation9 [shape = 'u8[8192]{0}', space=vmem, size = 0x2000, scoped, tag = 'output window, operand 0, single buffered']
    %10 = vsyncpa [#allocation4], 0
    %11 = vsyncpa [#allocation7], 0
    %12 = vsyncpa [#allocation5], 0
    // Predicated region
    $region2: #{tpu_custom_call.1} parent=1 // pred_check
      _
    $region3: #{tpu_custom_call.1} parent=1 // pred_check_branch
      %14 = sbr.rel (0) target = $region5
    $region4: #{tpu_custom_call.1} parent=1 // pred_region
      %s16 = ssub.s32 128, 128
      %17 = vsyncadd [#allocation4], %s16
      %s18 = sshll.u32 [#allocation3], 4
      %s19 = int_to_ptr.vmem [resolvable:$true] %s18
      %24 = dma.hbm_to_vmem [thread:$0]  %s0, 128, %s19, [#allocation4], 64, 64, 4
    $region5: #{tpu_custom_call.1} parent=1 // pred_fallthru
      _
    // Predicated region
    $region6: #{tpu_custom_call.1} parent=1 // pred_check
      _
    $region7: #{tpu_custom_call.1} parent=1 // pred_check_branch
      %26 = sbr.rel (0) target = $region9
    $region8: #{tpu_custom_call.1} parent=1 // pred_region
      %s28 = ssub.s32 256, 256
      %29 = vsyncadd [#allocation7], %s28
      %s30 = sshll.u32 [#allocation6], 4
      %s31 = int_to_ptr.vmem [resolvable:$true] %s30
      %36 = dma.hbm_to_vmem [thread:$0]  %s1, 256, %s31, [#allocation7], 64, 64, 4
    $region9: #{tpu_custom_call.1} parent=1 // pred_fallthru
      _
    // Predicated region
    $region10: #{tpu_custom_call.1} parent=1 // pred_check
      _
    $region11: #{tpu_custom_call.1} parent=1 // pred_check_branch
      %38 = sbr.rel (0) target = $region13
    $region12: #{tpu_custom_call.1} parent=1 // pred_region
      _
    $region13: #{tpu_custom_call.1} parent=1 // pred_fallthru
      _
    // Predicated region
    $region14: #{tpu_custom_call.1} parent=1 // pred_check
      _
    $region15: #{tpu_custom_call.1} parent=1 // pred_check_branch
      %40 = sbr.rel (0) target = $region17
    $region16: #{tpu_custom_call.1} parent=1 // pred_region
      %s42 = ssub.s32 256, 256
      %43 = vsyncadd [#allocation7], %s42
      %s44 = sshll.u32 [#allocation8], 4
      %s45 = int_to_ptr.vmem [resolvable:$true] %s44
      %50 = dma.hbm_to_vmem [thread:$0]  %s3, 256, %s45, [#allocation7], 64, 64, 4
    $region17: #{tpu_custom_call.1} parent=1 // pred_fallthru
      _
    // Predicated region
    $region18: #{tpu_custom_call.1} parent=1 // pred_check
      _
    $region19: #{tpu_custom_call.1} parent=1 // pred_check_branch
      %52 = sbr.rel (0) target = $region21
    $region20: #{tpu_custom_call.1} parent=1 // pred_region
      _
    $region21: #{tpu_custom_call.1} parent=1 // pred_fallthru
      _
    // Predicated region
    $region22: #{tpu_custom_call.1} parent=1 // pred_check
      _
    $region23: #{tpu_custom_call.1} parent=1 // pred_check_branch
      %54 = sbr.rel (0) target = $region25
    $region24: #{tpu_custom_call.1} parent=1 // pred_region
      %55 = dma.done [#allocation4], 128
    $region25: #{tpu_custom_call.1} parent=1 // pred_fallthru
      _
    // Predicated region
    $region26: #{tpu_custom_call.1} parent=1 // pred_check
      _
    $region27: #{tpu_custom_call.1} parent=1 // pred_check_branch
      %57 = sbr.rel (0) target = $region29
    $region28: #{tpu_custom_call.1} parent=1 // pred_region
      %58 = dma.done [#allocation7], 256
    $region29: #{tpu_custom_call.1} parent=1 // pred_fallthru
      _
    // Predicated region
    $region30: #{tpu_custom_call.1} parent=1 // pred_check
      _
    $region31: #{tpu_custom_call.1} parent=1 // pred_check_branch
      %60 = sbr.rel (0) target = $region33
    $region32: #{tpu_custom_call.1} parent=1 // pred_region
      %61 = dma.done [#allocation7], 256
    $region33: #{tpu_custom_call.1} parent=1 // pred_fallthru
      _
    %p63 = scmp.eq.s32.totalorder 0, 0
    // Predicated region
    $region34: #{tpu_custom_call.1} parent=1 // pred_check
      %p64 = pneg %p63
    $region35: #{tpu_custom_call.1} parent=1 // pred_check_branch
      %66 = sbr.rel (%p64) target = $region37
    $region36: #{tpu_custom_call.1} parent=1 // pred_region
      %vm67 = vcmask 261120
      %68 = vst.msk [vmem:[#allocation2] sm:$0xff] %vm67, 0.0
      %69 = vst.msk [vmem:[#allocation2 + $0x8] sm:$0xff] %vm67, 0.0
    $region37: #{tpu_custom_call.1} parent=1 // pred_fallthru
      _
    %v70 = vld [vmem:[#allocation2] sm:$0xff]
    %v71 = vld [vmem:[#allocation2 + $0x8] sm:$0xff]
    %v72 = vld [vmem:[#allocation3] sm:$0xf]
    %v73 = vld [vmem:[#allocation3 + $0x4] sm:$0xf]
    %v74 = vld [vmem:[#allocation6] sm:$0xf]
    %v75 = vld [vmem:[#allocation6 + $0x4] sm:$0xf]
    %v76 = vld [vmem:[#allocation6 + $0x8] sm:$0xf]
    %v77 = vld [vmem:[#allocation6 + $0xc] sm:$0xf]
    %v80 = vunpack.c.l.b16 %v72
    %v81 = vunpack.c.l.b16 %v73
    %v82 = vpack.c.b16 %v81, %v80
    %v87 = vunpack.c.l.b16 %v74
    %v88 = vunpack.c.l.b16 %v75
    %v89 = vunpack.c.l.b16 %v76
    %v90 = vunpack.c.l.b16 %v77
    %v91 = vpack.c.b16 %v88, %v87
    %v92 = vpack.c.b16 %v90, %v89
    %vm95 = vcmask 261120
    %v97 = vsel %vm95, %v82, 0
    %99 = vmatprep.subr.bf16.mxu0 0
    %100 = vmatpush1.bf16.msra.mxu0 0
    %101 = vmatprep.subr.bf16.mxu0 0
    %102 = vmatpush1.bf16.msra.mxu0 0
    %103 = vmatprep.subr.bf16.mxu0 0
    %104 = vmatpush1.bf16.msra.mxu0 0
    %105 = vmatprep.subr.bf16.mxu0 0
    %106 = vmatpush1.bf16.msra.mxu0 0
    %107 = vmatprep.subr.bf16.mxu0 0
    %108 = vmatpush1.bf16.msra.mxu0 0
    %109 = vmatprep.subr.bf16.mxu0 0
    %110 = vmatpush1.bf16.msra.mxu0 0
    %111 = vmatprep.subr.bf16.mxu0 0
    %112 = vmatpush1.bf16.msra.mxu0 %v92
    %113 = vmatprep.subr.bf16.mxu0 0
    %114 = vmatpush1.bf16.msra.mxu0 %v91
    %115 = vmatprep.subr.bf16.mxu0 0
    %116 = vmatpush2.bf16.msra.mxu0 0
    %117 = vmatprep.subr.bf16.mxu0 0
    %118 = vmatpush2.bf16.msra.mxu0 0
    %119 = vmatprep.subr.bf16.mxu0 0
    %120 = vmatpush2.bf16.msra.mxu0 0
    %121 = vmatprep.subr.bf16.mxu0 0
    %122 = vmatpush2.bf16.msra.mxu0 0
    %123 = vmatprep.subr.bf16.mxu0 0
    %124 = vmatpush2.bf16.msra.mxu0 0
    %125 = vmatprep.subr.bf16.mxu0 0
    %126 = vmatpush2.bf16.msra.mxu0 0
    %127 = vmatprep.subr.bf16.mxu0 0
    %128 = vmatpush2.bf16.msra.mxu0 0
    %129 = vmatprep.subr.bf16.mxu0 0
    %130 = vmatpush2.bf16.msra.mxu0 0
    %131 = vmatprep.mubr.bf16.mxu0 0
    %132 = vmatmul.mubr.bf16.gmra.mxu0 %v97
    %v133 = vpop.f32.mrf.mxu0
    %v134 = vadd.f32 0.0, %v133
    %v135 = vpop.f32.mrf.mxu0
    %v136 = vpop.f32.mrf.mxu0
    %v137 = vadd.f32 0.0, %v136
    %v138 = vpop.f32.mrf.mxu0
    %139 = vdwg.mxu0
    %v140 = vadd.f32 %v70, %v134
    %v141 = vadd.f32 %v71, %v137
    %142 = vst.msk [vmem:[#allocation2] sm:$0xff] %vm95, %v140
    %143 = vst.msk [vmem:[#allocation2 + $0x8] sm:$0xff] %vm95, %v141
    // Predicated region
    $region38: #{tpu_custom_call.1} parent=1 // pred_check
      %p144 = pneg %p63
    $region39: #{tpu_custom_call.1} parent=1 // pred_check_branch
      %146 = sbr.rel (%p144) target = $region41
    $region40: #{tpu_custom_call.1} parent=1 // pred_region
      %v147 = vld [vmem:[#allocation2] sm:$0xff]
      %v148 = vld [vmem:[#allocation2 + $0x8] sm:$0xff]
      %v149 = vld [vmem:[%s2] sm:$0x1]
      %v151 = vlaneseq
      %v152 = vshrl.u32 %v151, 7
      %v153 = vsub.s32 0, %v152
      %v154 = vrot.slane %v149, %v153
      %v156 = vadd.f32 %v147, %v154
      %v157 = vadd.f32 %v148, %v154
      %v158 = vtanh.pop %v156
      %v159 = vtanh.pop %v157
      %v160 = vpack.c.bf16 %v159, %v158
      %v161 = vld [vmem:[#allocation8] sm:$0xf]
      %v162 = vld [vmem:[#allocation8 + $0x4] sm:$0xf]
      %v163 = vld [vmem:[#allocation8 + $0x8] sm:$0xf]
      %v164 = vld [vmem:[#allocation8 + $0xc] sm:$0xf]
      %v165 = vld [vmem:[%s4] sm:$0x1]
      %v167 = vlaneseq
      %v168 = vshrl.u32 %v167, 7
      %v169 = vsub.s32 0, %v168
      %v170 = vrot.slane %v165, %v169
      %v176 = vunpack.c.l.b16 %v161
      %v177 = vunpack.c.l.b16 %v162
      %v178 = vunpack.c.l.b16 %v163
      %v179 = vunpack.c.l.b16 %v164
      %v180 = vpack.c.b16 %v177, %v176
      %v181 = vpack.c.b16 %v179, %v178
      %v185 = vsel %vm95, %v160, 0
      %187 = vmatprep.subr.bf16.mxu0 0
      %188 = vmatpush1.bf16.msra.mxu0 0
      %189 = vmatprep.subr.bf16.mxu0 0
      %190 = vmatpush1.bf16.msra.mxu0 0
      %191 = vmatprep.subr.bf16.mxu0 0
      %192 = vmatpush1.bf16.msra.mxu0 0
      %193 = vmatprep.subr.bf16.mxu0 0
      %194 = vmatpush1.bf16.msra.mxu0 0
      %195 = vmatprep.subr.bf16.mxu0 0
      %196 = vmatpush1.bf16.msra.mxu0 0
      %197 = vmatprep.subr.bf16.mxu0 0
      %198 = vmatpush1.bf16.msra.mxu0 0
      %199 = vmatprep.subr.bf16.mxu0 0
      %200 = vmatpush1.bf16.msra.mxu0 %v181
      %201 = vmatprep.subr.bf16.mxu0 0
      %202 = vmatpush1.bf16.msra.mxu0 %v180
      %203 = vmatprep.subr.bf16.mxu0 0
      %204 = vmatpush2.bf16.msra.mxu0 0
      %205 = vmatprep.subr.bf16.mxu0 0
      %206 = vmatpush2.bf16.msra.mxu0 0
      %207 = vmatprep.subr.bf16.mxu0 0
      %208 = vmatpush2.bf16.msra.mxu0 0
      %209 = vmatprep.subr.bf16.mxu0 0
      %210 = vmatpush2.bf16.msra.mxu0 0
      %211 = vmatprep.subr.bf16.mxu0 0
      %212 = vmatpush2.bf16.msra.mxu0 0
      %213 = vmatprep.subr.bf16.mxu0 0
      %214 = vmatpush2.bf16.msra.mxu0 0
      %215 = vmatprep.subr.bf16.mxu0 0
      %216 = vmatpush2.bf16.msra.mxu0 0
      %217 = vmatprep.subr.bf16.mxu0 0
      %218 = vmatpush2.bf16.msra.mxu0 0
      %219 = vmatprep.mubr.bf16.mxu0 0
      %220 = vmatmul.mubr.bf16.gmra.mxu0 %v185
      %v221 = vpop.f32.mrf.mxu0
      %v222 = vadd.f32 %v170, %v221
      %v223 = vpop.f32.mrf.mxu0
      %v224 = vpop.f32.mrf.mxu0
      %v225 = vadd.f32 %v170, %v224
      %v226 = vpop.f32.mrf.mxu0
      %227 = vdwg.mxu0
      %228 = vst [vmem:[#allocation9] sm:$0xff] %v222
      %229 = vst [vmem:[#allocation9 + $0x8] sm:$0xff] %v225
    $region41: #{tpu_custom_call.1} parent=1 // pred_fallthru
      _
    // Predicated region
    $region42: #{tpu_custom_call.1} parent=1 // pred_check
      _
    $region43: #{tpu_custom_call.1} parent=1 // pred_check_branch
      %231 = sbr.rel (0) target = $region45
    $region44: #{tpu_custom_call.1} parent=1 // pred_region
      %s233 = ssub.s32 256, 256
      %234 = vsyncadd [#allocation5], %s233
      %s235 = sshll.u32 [#allocation9], 4
      %s236 = int_to_ptr.vmem [resolvable:$true] %s235
      %241 = dma.vmem_to_hbm [thread:$0]  %s236, 256, %s5, [#allocation5], 128, 128, 8
    $region45: #{tpu_custom_call.1} parent=1 // pred_fallthru
      _
    // Predicated region
    $region46: #{tpu_custom_call.1} parent=1 // pred_check
      _
    $region47: #{tpu_custom_call.1} parent=1 // pred_check_branch
      %243 = sbr.rel (0) target = $region49
    $region48: #{tpu_custom_call.1} parent=1 // pred_region
      %244 = dma.done [#allocation5], 256
    $region49: #{tpu_custom_call.1} parent=1 // pred_fallthru
      _
    %245 = vsyncpa [#allocation4], 1
    %246 = vsyncpa [#allocation7], 1
    %247 = vsyncpa [#allocation5], 1

</llo_original>
